<compile_context>
chip_gen: v7x
topology: tpu7x:2x2x1
jax: 0.10.0
libtpu: 0.0.40
codegen_flags: <defaults>
</compile_context>

<pallas_src>
import math

import jax
import jax.numpy as jnp
import numpy as np
from jax.experimental import pallas as pl
from jax.experimental.pallas import tpu as pltpu


# ----------------------------- GELU (exact) ---------------------------------

def _gelu_exact(x):
    # PyTorch nn.GELU() default: 0.5 * x * (1 + erf(x / sqrt(2))).
    # A&S 7.1.26 erf approximation (max abs err ~1.5e-7) with:
    #   * the 1/sqrt(2) prescale folded into the constant p,
    #   * exp(-z^2) -> exp(-x*x/2),
    #   * the sign select folded into |x|:
    #       gelu(x) = 0.5 * (x + |x| * (1 - poly(t) * exp(-x*x/2)))
    # The divide runs as EUP approx-reciprocal + one Newton step (f32 level).
    p = 0.3275911 / math.sqrt(2.0)
    a1, a2, a3, a4, a5 = 0.254829592, -0.284496736, 1.421413741, -1.453152027, 1.061405429
    ax = jnp.abs(x)
    d = 1.0 + p * ax
    t = pl.reciprocal(d, approx=True)
    t = t * (2.0 - d * t)            # one Newton-Raphson step -> ~f32 accurate 1/d
    poly = ((((a5 * t + a4) * t + a3) * t + a2) * t + a1) * t
    y = 1.0 - poly * jnp.exp(-0.5 * x * x)
    return 0.5 * (x + ax * y)


# ----------------------------- kernel bodies --------------------------------

def _ffn_tile(x, w1, b1, w2, cast_bf16):
    """gelu(x @ w1 + b1) @ w2 on one tile, f32 result."""
    if cast_bf16:
        x = x.astype(jnp.bfloat16)
        w1 = w1.astype(jnp.bfloat16)
        w2 = w2.astype(jnp.bfloat16)
    h = jnp.dot(x, w1, preferred_element_type=jnp.float32)
    h = _gelu_exact(h + b1.astype(jnp.float32))
    return jnp.dot(h.astype(w2.dtype), w2, preferred_element_type=jnp.float32)


def _make_resident_kernel(cast_bf16):
    # Single hidden tile (weights resident): no accumulator scratch at all.
    def kernel(x_ref, w1_ref, b1_ref, w2_ref, b2_ref, o_ref):
        out = _ffn_tile(x_ref[...], w1_ref[...], b1_ref[...], w2_ref[...], cast_bf16)
        o_ref[...] = (out + b2_ref[...].astype(jnp.float32)).astype(o_ref.dtype)
    return kernel


def _make_streamed_kernel(cast_bf16):
    # Hidden axis tiled (innermost, "arbitrary"); accumulate partials in f32.
    def kernel(x_ref, w1_ref, b1_ref, w2_ref, b2_ref, o_ref, acc_ref):
        k = pl.program_id(1)
        part = _ffn_tile(x_ref[...], w1_ref[...], b1_ref[...], w2_ref[...], cast_bf16)

        @pl.when(k == 0)
        def _assign():
            acc_ref[...] = part

        @pl.when(k != 0)
        def _accumulate():
            acc_ref[...] += part

        @pl.when(k == pl.num_programs(1) - 1)
        def _finalize():
            o_ref[...] = (acc_ref[...] + b2_ref[...].astype(jnp.float32)).astype(o_ref.dtype)
    return kernel


# ----------------------------- tiling helpers -------------------------------

def _round_up(x, m):
    return ((x + m - 1) // m) * m


def _device_vmem_bytes():
    try:
        info = pltpu.get_tpu_info()
        for name in ("vmem_capacity_bytes", "vmem_size_bytes", "vmem_bytes"):
            cap = getattr(info, name, None)
            if cap:
                return int(cap)
    except Exception:
        pass
    return 64 * 1024 * 1024   # conservative fallback: v7x per-TensorCore VMEM


def _pick_block_k(hidden, dim, dsize, budget):
    """Return (block_k, resident). Resident iff both weight matrices fit in ~half the budget."""
    weight_bytes = 2 * dim * hidden * dsize          # W1 + W2, one buffer each
    if weight_bytes <= budget // 2:
        return hidden, True
    for cand in (512, 384, 256, 128):                # streamed hidden tiles
        if hidden % cand == 0:
            return cand, False
    # No nice divisor: fall back to a single (possibly large) tile.
    return hidden, True


def _tile_footprint(block_m, block_k, dim, hidden, dsize, resident):
    """Conservative (double-buffered) VMEM footprint estimate in bytes."""
    x_t = 2 * block_m * dim * dsize
    o_t = 2 * block_m * dim * dsize
    if resident:
        w_t = 2 * (dim * hidden + hidden * dim + hidden + dim) * dsize
        acc = 0
    else:
        w_t = 2 * (dim * block_k + block_k * dim + block_k + dim) * dsize
        acc = block_m * dim * 4
    return x_t + o_t + w_t + acc


def _pick_block_m(M, fits):
    Mup8 = _round_up(M, 8)
    candidates = [c for c in (512, 384, 256, 128, 64, 32, 16, 8) if c <= Mup8]
    if not candidates:
        candidates = [Mup8]
    fitting = [c for c in candidates if fits(c)] or [candidates[-1]]
    # Largest candidate whose M-padding waste is <= 25%.
    for bm in fitting:
        Mp = _round_up(M, bm)
        if (Mp - M) / Mp <= 0.25:
            return bm
    # Everything pads heavily; pick the candidate with the least padding
    # (break ties toward the larger tile).
    return min(fitting, key=lambda bm: (_round_up(M, bm), -bm))


# ----------------------------- entry point -----------------------------------

def feed_forward(x, w1, b1, w2, b2, *, block_m=None, block_k=None,
                 cast_f32_to_bf16=False):
    """x: (B, N, dim); w1: (dim, hidden); b1: (hidden,); w2: (hidden, dim); b2: (dim,)."""
    B, N, dim = x.shape
    hidden = w1.shape[1]
    M = B * N
    dsize = jnp.dtype(x.dtype).itemsize

    device_vmem = _device_vmem_bytes()
    budget = max(32 << 20, device_vmem - (16 << 20))   # v7x -> ~48 MiB, v6e/v5e -> ~112 MiB

    # --- hidden-axis tiling / regime selection ---
    if block_k is None:
        block_k, resident = _pick_block_k(hidden, dim, dsize, budget)
    else:
        block_k = min(block_k, hidden)
        resident = (block_k == hidden)
    assert hidden % block_k == 0, "hidden must be divisible by block_k"

    # --- M-axis tiling ---
    if block_m is None:
        def fits(bm):
            return _tile_footprint(bm, block_k, dim, hidden, dsize, resident) <= budget - (2 << 20)
        block_m = _pick_block_m(M, fits)
    else:
        block_m = max(8, min(_round_up(block_m, 8), _round_up(M, 8)))

    xf = x.reshape(M, dim)
    Mp = _round_up(M, block_m)
    if Mp != M:
        xf = jnp.pad(xf, ((0, Mp - M), (0, 0)))

    b1_2d = b1.reshape(1, hidden)
    b2_2d = b2.reshape(1, dim)

    cast_bf16 = bool(cast_f32_to_bf16) and xf.dtype == jnp.float32
    num_m = Mp // block_m

    needed = _tile_footprint(block_m, block_k, dim, hidden, dsize, resident) + (2 << 20)
    vmem_limit = int(min(device_vmem - (4 << 20), max(needed, 16 << 20)))

    weight_reads = (dim * hidden + hidden * dim) * (1 if resident else num_m)
    cost = pl.CostEstimate(
        flops=2 * 2 * Mp * dim * hidden,               # two matmuls
        transcendentals=2 * Mp * hidden,               # exp + reciprocal per hidden element
        bytes_accessed=int((Mp * dim                   # x read
                            + weight_reads             # weight reads
                            + hidden + dim             # biases
                            + Mp * dim) * dsize),      # output write
    )

    if resident:
        grid = (num_m,)
        in_specs = [
            pl.BlockSpec((block_m, dim), lambda i: (i, 0)),     # x tile
            pl.BlockSpec((dim, hidden), lambda i: (0, 0)),      # W1 (resident)
            pl.BlockSpec((1, hidden), lambda i: (0, 0)),        # b1 (resident)
            pl.BlockSpec((hidden, dim), lambda i: (0, 0)),      # W2 (resident)
            pl.BlockSpec((1, dim), lambda i: (0, 0)),           # b2 (resident)
        ]
        out_spec = pl.BlockSpec((block_m, dim), lambda i: (i, 0))
        scratch = []
        kernel = _make_resident_kernel(cast_bf16)
        dim_sem = ("parallel",)
    else:
        grid = (num_m, hidden // block_k)
        in_specs = [
            pl.BlockSpec((block_m, dim), lambda i, k: (i, 0)),   # x rows (held over k)
            pl.BlockSpec((dim, block_k), lambda i, k: (0, k)),   # W1 hidden tile
            pl.BlockSpec((1, block_k), lambda i, k: (0, k)),     # b1 hidden tile
            pl.BlockSpec((block_k, dim), lambda i, k: (k, 0)),   # W2 hidden tile
            pl.BlockSpec((1, dim), lambda i, k: (0, 0)),         # b2
        ]
        out_spec = pl.BlockSpec((block_m, dim), lambda i, k: (i, 0))
        scratch = [pltpu.VMEM((block_m, dim), jnp.float32)]
        kernel = _make_streamed_kernel(cast_bf16)
        dim_sem = ("parallel", "arbitrary")

    out = pl.pallas_call(
        kernel,
        out_shape=jax.ShapeDtypeStruct((Mp, dim), x.dtype),
        grid_spec=pltpu.PrefetchScalarGridSpec(
            num_scalar_prefetch=0,
            grid=grid,
            in_specs=in_specs,
            out_specs=out_spec,
            scratch_shapes=scratch,
        ),
        compiler_params=pltpu.CompilerParams(
            dimension_semantics=dim_sem,
            vmem_limit_bytes=vmem_limit,
        ),
        cost_estimate=cost,
    )(xf, w1, b1_2d, w2, b2_2d)

    return out[:M].reshape(B, N, dim)


# ----------------------------- reference & tests ----------------------------

def _reference(x, w1, b1, w2, b2):
    h = jnp.einsum("bnd,dh->bnh", x, w1) + b1
    h = jax.nn.gelu(h, approximate=False)
    return jnp.einsum("bnh,hd->bnd", h, w2) + b2


if __name__ == "__main__":
    key = jax.random.PRNGKey(0)

    # ---- test 1: small f32 problem (weights-resident, no accumulator) ----
    B, N, dim = 2, 8, 32
    hidden = dim * 4
    kx, kw1, kb1, kw2, kb2, k2 = jax.random.split(key, 6)

    x = jax.random.normal(kx, (B, N, dim), dtype=jnp.float32)
    bound1 = 1.0 / math.sqrt(dim)
    w1 = jax.random.uniform(kw1, (dim, hidden), jnp.float32, -bound1, bound1)
    b1 = jax.random.uniform(kb1, (hidden,), jnp.float32, -bound1, bound1)
    bound2 = 1.0 / math.sqrt(hidden)
    w2 = jax.random.uniform(kw2, (hidden, dim), jnp.float32, -bound2, bound2)
    b2 = jax.random.uniform(kb2, (dim,), jnp.float32, -bound2, bound2)

    y = jax.block_until_ready(feed_forward(x, w1, b1, w2, b2))
    y_ref = _reference(x, w1, b1, w2, b2)
    np.testing.assert_allclose(np.asarray(y), np.asarray(y_ref), rtol=1e-4, atol=1e-4)

    # ---- test 2: bf16 path, large M tile (block_m auto -> 512), resident ----
    B2, N2, dim2 = 2, 256, 256
    hidden2 = dim2 * 4
    kx2, kw12, kb12, kw22, kb22, k3 = jax.random.split(k2, 6)

    x2 = jax.random.normal(kx2, (B2, N2, dim2), dtype=jnp.float32).astype(jnp.bfloat16)
    b1a = 1.0 / math.sqrt(dim2)
    w12 = jax.random.uniform(kw12, (dim2, hidden2), jnp.float32, -b1a, b1a).astype(jnp.bfloat16)
    b12 = jax.random.uniform(kb12, (hidden2,), jnp.float32, -b1a, b1a).astype(jnp.bfloat16)
    b2a = 1.0 / math.sqrt(hidden2)
    w22 = jax.random.uniform(kw22, (hidden2, dim2), jnp.float32, -b2a, b2a).astype(jnp.bfloat16)
    b22 = jax.random.uniform(kb22, (dim2,), jnp.float32, -b2a, b2a).astype(jnp.bfloat16)

    y2 = jax.block_until_ready(feed_forward(x2, w12, b12, w22, b22))
    y2_ref = _reference(x2.astype(jnp.float32), w12.astype(jnp.float32),
                        b12.astype(jnp.float32), w22.astype(jnp.float32),
                        b22.astype(jnp.float32))
    np.testing.assert_allclose(np.asarray(y2, dtype=np.float32),
                               np.asarray(y2_ref), rtol=2e-2, atol=2e-2)

    # ---- test 3: forced streamed-k regime (accumulator path, multiple k tiles) ----
    B3, N3, dim3 = 2, 192, 128
    hidden3 = dim3 * 4
    kx3, kw13, kb13, kw23, kb23 = jax.random.split(k3, 5)

    x3 = jax.random.normal(kx3, (B3, N3, dim3), dtype=jnp.float32)
    b1c = 1.0 / math.sqrt(dim3)
    w13 = jax.random.uniform(kw13, (dim3, hidden3), jnp.float32, -b1c, b1c)
    b13 = jax.random.uniform(kb13, (hidden3,), jnp.float32, -b1c, b1c)
    b2c = 1.0 / math.sqrt(hidden3)
    w23 = jax.random.uniform(kw23, (hidden3, dim3), jnp.float32, -b2c, b2c)
    b23 = jax.random.uniform(kb23, (dim3,), jnp.float32, -b2c, b2c)

    y3 = jax.block_until_ready(feed_forward(x3, w13, b13, w23, b23, block_k=256))
    y3_ref = _reference(x3, w13, b13, w23, b23)
    np.testing.assert_allclose(np.asarray(y3), np.asarray(y3_ref), rtol=1e-4, atol=1e-4)

    print("KERNEL_OK")
</pallas_src>

<mosaic_0001>
module attributes {stable_mosaic.version = 11 : i64} {
  func.func @kernel(%arg0: i32, %arg1: memref<16x32xf32, #tpu.memory_space<vmem>>, %arg2: memref<32x128xf32, #tpu.memory_space<vmem>>, %arg3: memref<1x128xf32, #tpu.memory_space<vmem>>, %arg4: memref<128x32xf32, #tpu.memory_space<vmem>>, %arg5: memref<1x32xf32, #tpu.memory_space<vmem>>, %arg6: memref<16x32xf32, #tpu.memory_space<vmem>>) attributes {dimension_semantics = [#tpu.dimension_semantics<parallel>], iteration_bounds = array<i64: 1>, scalar_prefetch = 0 : i64, scratch_operands = 0 : i64, tpu.core_type = #tpu.core_type<tc>, window_params = [{transform_indices = @transform_0, window_bounds = array<i64: 16, 32>}, {pipeline_mode = #tpu.pipeline_mode<synchronous>, transform_indices = @transform_1, window_bounds = array<i64: 32, 128>}, {pipeline_mode = #tpu.pipeline_mode<synchronous>, transform_indices = @transform_2, window_bounds = array<i64: 1, 128>}, {pipeline_mode = #tpu.pipeline_mode<synchronous>, transform_indices = @transform_3, window_bounds = array<i64: 128, 32>}, {pipeline_mode = #tpu.pipeline_mode<synchronous>, transform_indices = @transform_4, window_bounds = array<i64: 1, 32>}, {transform_indices = @transform_5, window_bounds = array<i64: 16, 32>}]} {
    %c0 = arith.constant 0 : index
    %c0_0 = arith.constant 0 : index
    %0 = vector.load %arg1[%c0, %c0_0] : memref<16x32xf32, #tpu.memory_space<vmem>>, vector<16x32xf32>
    %c0_1 = arith.constant 0 : index
    %c0_2 = arith.constant 0 : index
    %1 = vector.load %arg2[%c0_1, %c0_2] : memref<32x128xf32, #tpu.memory_space<vmem>>, vector<32x128xf32>
    %c0_3 = arith.constant 0 : index
    %c0_4 = arith.constant 0 : index
    %2 = vector.load %arg3[%c0_3, %c0_4] : memref<1x128xf32, #tpu.memory_space<vmem>>, vector<1x128xf32>
    %c0_5 = arith.constant 0 : index
    %c0_6 = arith.constant 0 : index
    %3 = vector.load %arg4[%c0_5, %c0_6] : memref<128x32xf32, #tpu.memory_space<vmem>>, vector<128x32xf32>
    %cst = arith.constant dense<0.000000e+00> : vector<16x128xf32>
    %4 = tpu.matmul %0, %1, %cst {dimension_numbers = #tpu.dot_dimension_numbers<[1], [0], [0], [1], [0, 0, 1, 1], [], []>} : vector<16x32xf32>, vector<32x128xf32>, vector<16x128xf32> -> vector<16x128xf32>
    %5 = vector.broadcast %2 : vector<1x128xf32> to vector<16x128xf32>
    %6 = arith.addf %4, %5 : vector<16x128xf32>
    %7 = math.absf %6 : vector<16x128xf32>
    %cst_7 = arith.constant 0.231641889 : f32
    %8 = vector.broadcast %cst_7 : f32 to vector<16x128xf32>
    %9 = arith.mulf %8, %7 : vector<16x128xf32>
    %cst_8 = arith.constant 1.000000e+00 : f32
    %10 = vector.broadcast %cst_8 : f32 to vector<16x128xf32>
    %11 = arith.addf %10, %9 : vector<16x128xf32>
    %12 = tpu.reciprocal %11 {approx = true} : vector<16x128xf32> -> vector<16x128xf32>
    %13 = arith.mulf %11, %12 : vector<16x128xf32>
    %cst_9 = arith.constant 2.000000e+00 : f32
    %14 = vector.broadcast %cst_9 : f32 to vector<16x128xf32>
    %15 = arith.subf %14, %13 : vector<16x128xf32>
    %16 = arith.mulf %12, %15 : vector<16x128xf32>
    %cst_10 = arith.constant 1.06140542 : f32
    %17 = vector.broadcast %cst_10 : f32 to vector<16x128xf32>
    %18 = arith.mulf %17, %16 : vector<16x128xf32>
    %cst_11 = arith.constant -1.45315206 : f32
    %19 = vector.broadcast %cst_11 : f32 to vector<16x128xf32>
    %20 = arith.addf %18, %19 : vector<16x128xf32>
    %21 = arith.mulf %20, %16 : vector<16x128xf32>
    %cst_12 = arith.constant 1.42141378 : f32
    %22 = vector.broadcast %cst_12 : f32 to vector<16x128xf32>
    %23 = arith.addf %21, %22 : vector<16x128xf32>
    %24 = arith.mulf %23, %16 : vector<16x128xf32>
    %cst_13 = arith.constant -0.284496725 : f32
    %25 = vector.broadcast %cst_13 : f32 to vector<16x128xf32>
    %26 = arith.addf %24, %25 : vector<16x128xf32>
    %27 = arith.mulf %26, %16 : vector<16x128xf32>
    %cst_14 = arith.constant 0.254829586 : f32
    %28 = vector.broadcast %cst_14 : f32 to vector<16x128xf32>
    %29 = arith.addf %27, %28 : vector<16x128xf32>
    %30 = arith.mulf %29, %16 : vector<16x128xf32>
    %cst_15 = arith.constant -5.000000e-01 : f32
    %31 = vector.broadcast %cst_15 : f32 to vector<16x128xf32>
    %32 = arith.mulf %31, %6 : vector<16x128xf32>
    %33 = arith.mulf %32, %6 : vector<16x128xf32>
    %34 = math.exp %33 : vector<16x128xf32>
    %35 = arith.mulf %30, %34 : vector<16x128xf32>
    %cst_16 = arith.constant 1.000000e+00 : f32
    %36 = vector.broadcast %cst_16 : f32 to vector<16x128xf32>
    %37 = arith.subf %36, %35 : vector<16x128xf32>
    %38 = arith.mulf %7, %37 : vector<16x128xf32>
    %39 = arith.addf %6, %38 : vector<16x128xf32>
    %cst_17 = arith.constant 5.000000e-01 : f32
    %40 = vector.broadcast %cst_17 : f32 to vector<16x128xf32>
    %41 = arith.mulf %40, %39 : vector<16x128xf32>
    %cst_18 = arith.constant dense<0.000000e+00> : vector<16x32xf32>
    %42 = tpu.matmul %41, %3, %cst_18 {dimension_numbers = #tpu.dot_dimension_numbers<[1], [0], [0], [1], [0, 0, 1, 1], [], []>} : vector<16x128xf32>, vector<128x32xf32>, vector<16x32xf32> -> vector<16x32xf32>
    %c0_19 = arith.constant 0 : index
    %c0_20 = arith.constant 0 : index
    %43 = vector.load %arg5[%c0_19, %c0_20] : memref<1x32xf32, #tpu.memory_space<vmem>>, vector<1x32xf32>
    %44 = vector.broadcast %43 : vector<1x32xf32> to vector<16x32xf32>
    %45 = arith.addf %42, %44 : vector<16x32xf32>
    %c0_21 = arith.constant 0 : index
    %c0_22 = arith.constant 0 : index
    %46 = vector.load %arg6[%c0_21, %c0_22] : memref<16x32xf32, #tpu.memory_space<vmem>>, vector<16x32xf32>
    tpu.vector_store %arg6[%c0_21, %c0_22], %45 {strides = array<i32>} : memref<16x32xf32, #tpu.memory_space<vmem>>, vector<16x32xf32>,
    return
  }
  func.func @transform_0(%arg0: i32) -> (i32, i32) {
    %c0_i32 = arith.constant 0 : i32
    %c0_i32_0 = arith.constant 0 : i32
    return %arg0, %c0_i32 : i32, i32
  }
  func.func @transform_1(%arg0: i32) -> (i32, i32) {
    %c0_i32 = arith.constant 0 : i32
    %c0_i32_0 = arith.constant 0 : i32
    %c0_i32_1 = arith.constant 0 : i32
    return %c0_i32, %c0_i32_0 : i32, i32
  }
  func.func @transform_2(%arg0: i32) -> (i32, i32) {
    %c0_i32 = arith.constant 0 : i32
    %c0_i32_0 = arith.constant 0 : i32
    %c0_i32_1 = arith.constant 0 : i32
    return %c0_i32, %c0_i32_0 : i32, i32
  }
  func.func @transform_3(%arg0: i32) -> (i32, i32) {
    %c0_i32 = arith.constant 0 : i32
    %c0_i32_0 = arith.constant 0 : i32
    %c0_i32_1 = arith.constant 0 : i32
    return %c0_i32, %c0_i32_0 : i32, i32
  }
  func.func @transform_4(%arg0: i32) -> (i32, i32) {
    %c0_i32 = arith.constant 0 : i32
    %c0_i32_0 = arith.constant 0 : i32
    %c0_i32_1 = arith.constant 0 : i32
    return %c0_i32, %c0_i32_0 : i32, i32
  }
  func.func @transform_5(%arg0: i32) -> (i32, i32) {
    %c0_i32 = arith.constant 0 : i32
    %c0_i32_0 = arith.constant 0 : i32
    return %arg0, %c0_i32 : i32, i32
  }
}

</mosaic_0001>

<llo_original>
// kernel: tpu_custom_call.1
$region0: #{tpu_custom_call.1}
  #allocation0 [shape = 'u32[]', space=smem, size = 0x4, offset = 0x4, fixed_abs, tag = 'smem constant byte address 0x4 - core index']
  #allocation1 [shape = 'u32[144,128]{1,0:T(1,128)}', space=vmem, size = 0x12000, scoped, tag = 'internal scratch']
  %s0 = inlined_call_operand.vmem [shape: f32[16,32], index: 0, kind: input, shape index: {}]
  %s1 = inlined_call_operand.vmem [shape: f32[32,128], index: 1, kind: input, shape index: {}]
  %s2 = inlined_call_operand.vmem [shape: f32[1,128], index: 2, kind: input, shape index: {}]
  %s3 = inlined_call_operand.vmem [shape: f32[128,32], index: 3, kind: input, shape index: {}]
  %s4 = inlined_call_operand.vmem [shape: f32[1,32], index: 4, kind: input, shape index: {}]
  %s5 = inlined_call_operand.hbm [shape: f32[16,32], index: 5, kind: output, shape index: {}]
  %s6 = sld [smem:[#allocation0]]
  $region30: #{tpu_custom_call.1} parent=0
    _
  %s8 = ssub.s32 1, %s6
  %s9 = scalar_select 0, %s8, %s6
  $region1: #{tpu_custom_call.1} parent=0
    #allocation2 [shape = 'u8[8192]{0}', space=vmem, size = 0x2000, scoped, tag = 'output window, operand 0, single buffered']
    #allocation3 [shape = 's32[1]{0}', space=sflag, size = 0x4, scoped, tag = 'scoped memory for tpu_custom_call.1']
    %10 = vsyncpa [#allocation3], 0
    // Predicated region
    $region2: #{tpu_custom_call.1} parent=1 // pred_check
      _
    $region3: #{tpu_custom_call.1} parent=1 // pred_check_branch
      %12 = sbr.rel (0) target = $region5
    $region4: #{tpu_custom_call.1} parent=1 // pred_region
      _
    $region5: #{tpu_custom_call.1} parent=1 // pred_fallthru
      _
    // Predicated region
    $region6: #{tpu_custom_call.1} parent=1 // pred_check
      _
    $region7: #{tpu_custom_call.1} parent=1 // pred_check_branch
      %14 = sbr.rel (0) target = $region9
    $region8: #{tpu_custom_call.1} parent=1 // pred_region
      _
    $region9: #{tpu_custom_call.1} parent=1 // pred_fallthru
      _
    // Predicated region
    $region10: #{tpu_custom_call.1} parent=1 // pred_check
      _
    $region11: #{tpu_custom_call.1} parent=1 // pred_check_branch
      %16 = sbr.rel (0) target = $region13
    $region12: #{tpu_custom_call.1} parent=1 // pred_region
      _
    $region13: #{tpu_custom_call.1} parent=1 // pred_fallthru
      _
    // Predicated region
    $region14: #{tpu_custom_call.1} parent=1 // pred_check
      _
    $region15: #{tpu_custom_call.1} parent=1 // pred_check_branch
      %18 = sbr.rel (0) target = $region17
    $region16: #{tpu_custom_call.1} parent=1 // pred_region
      _
    $region17: #{tpu_custom_call.1} parent=1 // pred_fallthru
      _
    // Predicated region
    $region18: #{tpu_custom_call.1} parent=1 // pred_check
      _
    $region19: #{tpu_custom_call.1} parent=1 // pred_check_branch
      %20 = sbr.rel (0) target = $region21
    $region20: #{tpu_custom_call.1} parent=1 // pred_region
      _
    $region21: #{tpu_custom_call.1} parent=1 // pred_fallthru
      _
    %v21 = vld [vmem:[%s0] sm:$0xff]
    %v22 = vld [vmem:[%s0 + $0x8] sm:$0xff]
    %v23 = vld [vmem:[%s1] sm:$0xff]
    %v24 = vld [vmem:[%s1 + $0x8] sm:$0xff]
    %v25 = vld [vmem:[%s1 + $0x10] sm:$0xff]
    %v26 = vld [vmem:[%s1 + $0x18] sm:$0xff]
    %v27 = vld [vmem:[%s2] sm:$0x1]
    %v28 = vld [vmem:[%s3] sm:$0xff]
    %v29 = vld [vmem:[%s3 + $0x8] sm:$0xff]
    %v30 = vld [vmem:[%s3 + $0x10] sm:$0xff]
    %v31 = vld [vmem:[%s3 + $0x18] sm:$0xff]
    %v32 = vld [vmem:[%s3 + $0x20] sm:$0xff]
    %v33 = vld [vmem:[%s3 + $0x28] sm:$0xff]
    %v34 = vld [vmem:[%s3 + $0x30] sm:$0xff]
    %v35 = vld [vmem:[%s3 + $0x38] sm:$0xff]
    %v36 = vld [vmem:[%s3 + $0x40] sm:$0xff]
    %v37 = vld [vmem:[%s3 + $0x48] sm:$0xff]
    %v38 = vld [vmem:[%s3 + $0x50] sm:$0xff]
    %v39 = vld [vmem:[%s3 + $0x58] sm:$0xff]
    %v40 = vld [vmem:[%s3 + $0x60] sm:$0xff]
    %v41 = vld [vmem:[%s3 + $0x68] sm:$0xff]
    %v42 = vld [vmem:[%s3 + $0x70] sm:$0xff]
    %v43 = vld [vmem:[%s3 + $0x78] sm:$0xff]
    %v45 = vlaneseq
    %v46 = vshrl.u32 %v45, 7
    %v47 = vsub.s32 0, %v46
    %v48 = vrot.slane %v27, %v47
    %vm50 = vcmask 261120
    %v52 = vsel %vm50, %v21, 0
    %v55 = vsel %vm50, %v22, 0
    %57 = vmatprep.subr.mxu0 0.0
    %58 = vmatpush1.msra.mxu0 %v23
    %59 = vmatprep.subr.mxu0 0.0
    %60 = vmatpush1.msra.mxu0 %v24
    %61 = vmatprep.subr.mxu0 0.0
    %62 = vmatpush1.msra.mxu0 %v25
    %63 = vmatprep.subr.mxu0 0.0
    %64 = vmatpush1.msra.mxu0 %v26
    %65 = vmatprep.subr.mxu0 0.0
    %66 = vmatpush1.msra.mxu0 0.0
    %67 = vmatprep.subr.mxu0 0.0
    %68 = vmatpush1.msra.mxu0 0.0
    %69 = vmatprep.subr.mxu0 0.0
    %70 = vmatpush1.msra.mxu0 0.0
    %71 = vmatprep.subr.mxu0 0.0
    %72 = vmatpush1.msra.mxu0 0.0
    %73 = vmatprep.subr.mxu0 0.0
    %74 = vmatpush1.msra.mxu0 0.0
    %75 = vmatprep.subr.mxu0 0.0
    %76 = vmatpush1.msra.mxu0 0.0
    %77 = vmatprep.subr.mxu0 0.0
    %78 = vmatpush1.msra.mxu0 0.0
    %79 = vmatprep.subr.mxu0 0.0
    %80 = vmatpush1.msra.mxu0 0.0
    %81 = vmatprep.subr.mxu0 0.0
    %82 = vmatpush1.msra.mxu0 0.0
    %83 = vmatprep.subr.mxu0 0.0
    %84 = vmatpush1.msra.mxu0 0.0
    %85 = vmatprep.subr.mxu0 0.0
    %86 = vmatpush1.msra.mxu0 0.0
    %87 = vmatprep.subr.mxu0 0.0
    %88 = vmatpush1.msra.mxu0 0.0
    %89 = vmatprep.subr.mxu0 0.0
    %90 = vmatpush1.msra.mxu0 0.0
    %91 = vmatprep.subr.mxu0 0.0
    %92 = vmatpush1.msra.mxu0 0.0
    %93 = vmatprep.subr.mxu0 0.0
    %94 = vmatpush1.msra.mxu0 0.0
    %95 = vmatprep.subr.mxu0 0.0
    %96 = vmatpush1.msra.mxu0 0.0
    %97 = vmatprep.subr.mxu0 0.0
    %98 = vmatpush1.msra.mxu0 0.0
    %99 = vmatprep.subr.mxu0 0.0
    %100 = vmatpush1.msra.mxu0 0.0
    %101 = vmatprep.subr.mxu0 0.0
    %102 = vmatpush1.msra.mxu0 0.0
    %103 = vmatprep.subr.mxu0 0.0
    %104 = vmatpush1.msra.mxu0 0.0
    %105 = vmatprep.subr.mxu0 0.0
    %106 = vmatpush1.msra.mxu0 0.0
    %107 = vmatprep.subr.mxu0 0.0
    %108 = vmatpush1.msra.mxu0 0.0
    %109 = vmatprep.subr.mxu0 0.0
    %110 = vmatpush1.msra.mxu0 0.0
    %111 = vmatprep.subr.mxu0 0.0
    %112 = vmatpush1.msra.mxu0 0.0
    %113 = vmatprep.subr.mxu0 0.0
    %114 = vmatpush1.msra.mxu0 0.0
    %115 = vmatprep.subr.mxu0 0.0
    %116 = vmatpush1.msra.mxu0 0.0
    %117 = vmatprep.subr.mxu0 0.0
    %118 = vmatpush1.msra.mxu0 0.0
    %119 = vmatprep.subr.mxu0 0.0
    %120 = vmatpush1.msra.mxu0 0.0
    %121 = vmatprep.mubr.f32.mxu0 0.0
    %122 = vmatmul.mubr.f32.gmra.mrb[0].mxu0 %v52
    %v123 = vpop.f32.mrb[0].mxu0
    %v124 = vadd.f32 %v48, %v123
    %v125 = vpop.f32.mrb[0].mxu0
    %126 = vmatprep.mubr.f32.mxu0 0.0
    %127 = vmatmul.mubr.f32.gmra.mrb[0].mxu0 %v55
    %v128 = vpop.f32.mrb[0].mxu0
    %v129 = vadd.f32 %v48, %v128
    %v130 = vpop.f32.mrb[0].mxu0
    %131 = vdwg.mxu0
    %v132 = vand.u32 2147483647, %v124
    %v133 = vand.u32 2147483647, %v129
    %v134 = vmul.f32 %v132, 0.23164189
    %v135 = vmul.f32 %v133, 0.23164189
    %v136 = vadd.f32 %v134, 1.0
    %v137 = vadd.f32 %v135, 1.0
    %v138 = vrcp.pop %v136
    %v139 = vrcp.pop %v137
    %v140 = vmul.f32 %v136, %v138
    %v141 = vmul.f32 %v137, %v139
    %v142 = vsub.f32 2.0, %v140
    %v143 = vsub.f32 2.0, %v141
    %v144 = vmul.f32 %v138, %v142
    %v145 = vmul.f32 %v139, %v143
    %v146 = vmul.f32 %v144, 1.0614054
    %v147 = vmul.f32 %v145, 1.0614054
    %v148 = vadd.f32 %v146, -1.4531521
    %v149 = vadd.f32 %v147, -1.4531521
    %v150 = vmul.f32 %v148, %v144
    %v151 = vmul.f32 %v149, %v145
    %v152 = vadd.f32 %v150, 1.4214138
    %v153 = vadd.f32 %v151, 1.4214138
    %v154 = vmul.f32 %v152, %v144
    %v155 = vmul.f32 %v153, %v145
    %v156 = vadd.f32 %v154, -0.28449672
    %v157 = vadd.f32 %v155, -0.28449672
    %v158 = vmul.f32 %v156, %v144
    %v159 = vmul.f32 %v157, %v145
    %v160 = vadd.f32 %v158, 0.2548296
    %v161 = vadd.f32 %v159, 0.2548296
    %v162 = vmul.f32 %v160, %v144
    %v163 = vmul.f32 %v161, %v145
    %v164 = vmul.f32 %v124, -0.5
    %v165 = vmul.f32 %v129, -0.5
    %v166 = vmul.f32 %v164, %v124
    %v167 = vmul.f32 %v165, %v129
    %v168 = vmul.f32 %v166, 1.442695
    %v169 = vpow.pop %v168
    %v170 = vmul.f32 %v167, 1.442695
    %v171 = vpow.pop %v170
    %v172 = vmul.f32 %v162, %v169
    %v173 = vmul.f32 %v163, %v171
    %v174 = vsub.f32 1.0, %v172
    %v175 = vsub.f32 1.0, %v173
    %v176 = vmul.f32 %v132, %v174
    %v177 = vmul.f32 %v133, %v175
    %v178 = vadd.f32 %v124, %v176
    %v179 = vadd.f32 %v129, %v177
    %v180 = vmul.f32 %v178, 0.5
    %v181 = vmul.f32 %v179, 0.5
    %v182 = vld [vmem:[%s4] sm:$0x1]
    %v184 = vlaneseq
    %v185 = vshrl.u32 %v184, 7
    %v186 = vsub.s32 0, %v185
    %v187 = vrot.slane %v182, %v186
    %189 = vmatprep.subr.mxu0 0.0
    %190 = vmatpush1.msra.mxu0 %v28
    %191 = vmatprep.subr.mxu0 0.0
    %192 = vmatpush1.msra.mxu0 %v29
    %193 = vmatprep.subr.mxu0 0.0
    %194 = vmatpush1.msra.mxu0 %v30
    %195 = vmatprep.subr.mxu0 0.0
    %196 = vmatpush1.msra.mxu0 %v31
    %197 = vmatprep.subr.mxu0 0.0
    %198 = vmatpush1.msra.mxu0 %v32
    %199 = vmatprep.subr.mxu0 0.0
    %200 = vmatpush1.msra.mxu0 %v33
    %201 = vmatprep.subr.mxu0 0.0
    %202 = vmatpush1.msra.mxu0 %v34
    %203 = vmatprep.subr.mxu0 0.0
    %204 = vmatpush1.msra.mxu0 %v35
    %205 = vmatprep.subr.mxu0 0.0
    %206 = vmatpush1.msra.mxu0 %v36
    %207 = vmatprep.subr.mxu0 0.0
    %208 = vmatpush1.msra.mxu0 %v37
    %209 = vmatprep.subr.mxu0 0.0
    %210 = vmatpush1.msra.mxu0 %v38
    %211 = vmatprep.subr.mxu0 0.0
    %212 = vmatpush1.msra.mxu0 %v39
    %213 = vmatprep.subr.mxu0 0.0
    %214 = vmatpush1.msra.mxu0 %v40
    %215 = vmatprep.subr.mxu0 0.0
    %216 = vmatpush1.msra.mxu0 %v41
    %217 = vmatprep.subr.mxu0 0.0
    %218 = vmatpush1.msra.mxu0 %v42
    %219 = vmatprep.subr.mxu0 0.0
    %220 = vmatpush1.msra.mxu0 %v43
    %221 = vmatprep.subr.mxu0 0.0
    %222 = vmatpush1.msra.mxu0 0.0
    %223 = vmatprep.subr.mxu0 0.0
    %224 = vmatpush1.msra.mxu0 0.0
    %225 = vmatprep.subr.mxu0 0.0
    %226 = vmatpush1.msra.mxu0 0.0
    %227 = vmatprep.subr.mxu0 0.0
    %228 = vmatpush1.msra.mxu0 0.0
    %229 = vmatprep.subr.mxu0 0.0
    %230 = vmatpush1.msra.mxu0 0.0
    %231 = vmatprep.subr.mxu0 0.0
    %232 = vmatpush1.msra.mxu0 0.0
    %233 = vmatprep.subr.mxu0 0.0
    %234 = vmatpush1.msra.mxu0 0.0
    %235 = vmatprep.subr.mxu0 0.0
    %236 = vmatpush1.msra.mxu0 0.0
    %237 = vmatprep.subr.mxu0 0.0
    %238 = vmatpush1.msra.mxu0 0.0
    %239 = vmatprep.subr.mxu0 0.0
    %240 = vmatpush1.msra.mxu0 0.0
    %241 = vmatprep.subr.mxu0 0.0
    %242 = vmatpush1.msra.mxu0 0.0
    %243 = vmatprep.subr.mxu0 0.0
    %244 = vmatpush1.msra.mxu0 0.0
    %245 = vmatprep.subr.mxu0 0.0
    %246 = vmatpush1.msra.mxu0 0.0
    %247 = vmatprep.subr.mxu0 0.0
    %248 = vmatpush1.msra.mxu0 0.0
    %249 = vmatprep.subr.mxu0 0.0
    %250 = vmatpush1.msra.mxu0 0.0
    %251 = vmatprep.subr.mxu0 0.0
    %252 = vmatpush1.msra.mxu0 0.0
    %253 = vmatprep.mubr.f32.mxu0 0.0
    %254 = vmatmul.mubr.f32.gmra.mrb[0].mxu0 %v180
    %v255 = vpop.f32.mrb[0].mxu0
    %v256 = vadd.f32 %v187, %v255
    %v257 = vpop.f32.mrb[0].mxu0
    %258 = vmatprep.mubr.f32.mxu0 0.0
    %259 = vmatmul.mubr.f32.gmra.mrb[0].mxu0 %v181
    %v260 = vpop.f32.mrb[0].mxu0
    %v261 = vadd.f32 %v187, %v260
    %v262 = vpop.f32.mrb[0].mxu0
    %263 = vdwg.mxu0
    %264 = vst.msk [vmem:[#allocation2] sm:$0xff] %vm50, %v256
    %265 = vst.msk [vmem:[#allocation2 + $0x8] sm:$0xff] %vm50, %v261
    // Predicated region
    $region22: #{tpu_custom_call.1} parent=1 // pred_check
      _
    $region23: #{tpu_custom_call.1} parent=1 // pred_check_branch
      %267 = sbr.rel (0) target = $region25
    $region24: #{tpu_custom_call.1} parent=1 // pred_region
      %s269 = ssub.s32 256, 256
      %270 = vsyncadd [#allocation3], %s269
      %s271 = sshll.u32 [#allocation2], 4
      %s272 = int_to_ptr.vmem [resolvable:$true] %s271
      %277 = dma.vmem_to_hbm [thread:$0]  %s272, 256, %s5, [#allocation3], 128, 128, 8
    $region25: #{tpu_custom_call.1} parent=1 // pred_fallthru
      _
    // Predicated region
    $region26: #{tpu_custom_call.1} parent=1 // pred_check
      _
    $region27: #{tpu_custom_call.1} parent=1 // pred_check_branch
      %279 = sbr.rel (0) target = $region29
    $region28: #{tpu_custom_call.1} parent=1 // pred_region
      %280 = dma.done [#allocation3], 256
    $region29: #{tpu_custom_call.1} parent=1 // pred_fallthru
      _
    %281 = vsyncpa [#allocation3], 1

</llo_original>
